<compile_context>
chip_gen: v5e
topology: v5e:2x2
jax: 0.10.0
libtpu: 0.0.40
codegen_flags: <defaults>
</compile_context>

<pallas_src>
import jax
import jax.numpy as jnp
from jax.experimental import pallas as pl
from jax.experimental.pallas import tpu as pltpu


def _lrelu(v):
    # nn.LeakyReLU(0.1)
    return jnp.where(v > 0, v, 0.1 * v)


def _round_up(x, m):
    return ((x + m - 1) // m) * m


# ---------------------------------------------------------------------------
# Packed parameter layout (lane-aligned with the output slab)
# ---------------------------------------------------------------------------
_WVEC_ROWS = 16
_V_BEMB, _V_GATE = 0, 1                              # [b_xy|b_pix], gate weights
_V_J0, _V_J1, _V_J2, _V_J3, _V_BJS = 2, 3, 4, 5, 6   # joint(+shape) FMA rows + bias
_V_BRNN, _V_BMAP, _V_BAFTER, _V_BNUM = 7, 8, 9, 10   # b_ih+b_hh, b_map, b_after, b_num


def _make_cfg(params):
    E = params["w_xy"].shape[1]
    assert E == 2, "GatedMapper hardcodes embedding_size=2"
    xs = params["w_xy"].shape[0]
    ps = params["w_pix"].shape[0]
    H = params["w_ih"].shape[0]
    M = params["w_map"].shape[1]
    O = params["w_num"].shape[1]
    S = params["w_shape"].shape[1]
    total = O + S + M + H + M
    # output-slab lane offsets: [num | shape | map_ | h | penult | pad]
    return dict(E=E, xs=xs, ps=ps, H=H, M=M, O=O, S=S,
                NO=0, SO=O, MO=O + S, HO=O + S + M, PO=O + S + M + H,
                total=total, L=_round_up(total, 128))


def _wmx_rows(cfg, with_hidden):
    """Sublane (row) offsets of each MXU weight block in the packed buffer."""
    L, xs, ps, H = cfg["L"], cfg["xs"], cfg["ps"], cfg["H"]
    off, r = {}, 0
    off["xy"] = r;    r += _round_up(xs, 8)
    off["pix"] = r;   r += _round_up(ps, 8)
    off["ih"] = r;    r += L
    if with_hidden:
        off["hh"] = r; r += _round_up(H, 8)
    off["map"] = r;   r += L
    off["after"] = r; r += L
    off["num"] = r;   r += L
    return off, r


def pack_params(params, cfg, with_hidden, op_dtype=jnp.float32):
    """Coalesce all weights/biases into two lane-dense buffers.

    MXU weights (wmx): K rows placed at the lane offsets where the LHS data
    lives, output columns placed at the lane offsets of the result in the
    output slab -> every in-kernel matmul / bias-add is full lane width.
    VPU rows (wvec): biases and the K=2 joint/shape/gate weight rows (f32).
    """
    f32 = jnp.float32
    E, xs, ps = cfg["E"], cfg["xs"], cfg["ps"]
    H, M, O, S = cfg["H"], cfg["M"], cfg["O"], cfg["S"]
    NO, SO, MO, HO, PO, L = (cfg["NO"], cfg["SO"], cfg["MO"], cfg["HO"],
                             cfg["PO"], cfg["L"])
    roff, rows = _wmx_rows(cfg, with_hidden)

    wmx = jnp.zeros((rows, L), f32)
    # xy / pix embeddings -> lanes 0:E and E:2E of the embedding result
    wmx = wmx.at[roff["xy"]:roff["xy"] + xs, 0:E].set(params["w_xy"].astype(f32))
    wmx = wmx.at[roff["pix"]:roff["pix"] + ps, E:2 * E].set(params["w_pix"].astype(f32))
    # rnn i->h: x lives at lanes HO:HO+H of its LHS, h lands at lanes HO:HO+H
    wmx = wmx.at[roff["ih"] + HO:roff["ih"] + HO + H, HO:HO + H].set(
        params["w_ih"].astype(f32))
    if with_hidden:
        wmx = wmx.at[roff["hh"]:roff["hh"] + H, HO:HO + H].set(
            params["w_hh"].astype(f32))
    # map readout: K rows at h lanes, columns at map lanes
    wmx = wmx.at[roff["map"] + HO:roff["map"] + HO + H, MO:MO + M].set(
        params["w_map"].astype(f32))
    # after_map: K rows at map lanes, columns at penult lanes
    wmx = wmx.at[roff["after"] + MO:roff["after"] + MO + M, PO:PO + M].set(
        params["w_after"].astype(f32))
    # num readout: K rows at penult lanes, columns at num lanes
    wmx = wmx.at[roff["num"] + PO:roff["num"] + PO + M, NO:NO + O].set(
        params["w_num"].astype(f32))

    wvec = jnp.zeros((_WVEC_ROWS, L), f32)
    wvec = wvec.at[_V_BEMB, 0:E].set(params["b_xy"][0].astype(f32))
    wvec = wvec.at[_V_BEMB, E:2 * E].set(params["b_pix"][0].astype(f32))
    wvec = wvec.at[_V_GATE, 0:1].set(params["w_gate"][0].astype(f32))
    wvec = wvec.at[_V_GATE, 1:2].set(params["w_gate"][1].astype(f32))
    # joint-embedding rows (at the x lanes HO:) with shape_readout folded into
    # the p0/p1 rows (at the shape lanes SO:) -> one FMA pass does both.
    wvec = wvec.at[_V_J0, HO:HO + H].set(params["w_joint_xy"][0].astype(f32))
    wvec = wvec.at[_V_J1, HO:HO + H].set(params["w_joint_xy"][1].astype(f32))
    wvec = wvec.at[_V_J2, HO:HO + H].set(params["w_joint_pix"][0].astype(f32))
    wvec = wvec.at[_V_J2, SO:SO + S].set(params["w_shape"][0].astype(f32))
    wvec = wvec.at[_V_J3, HO:HO + H].set(params["w_joint_pix"][1].astype(f32))
    wvec = wvec.at[_V_J3, SO:SO + S].set(params["w_shape"][1].astype(f32))
    wvec = wvec.at[_V_BJS, HO:HO + H].set(params["b_joint"][0].astype(f32))
    wvec = wvec.at[_V_BJS, SO:SO + S].set(params["b_shape"][0].astype(f32))
    # RNNCell adds both biases regardless of hidden -> fold once here
    wvec = wvec.at[_V_BRNN, HO:HO + H].set(
        (params["b_ih"][0] + params["b_hh"][0]).astype(f32))
    wvec = wvec.at[_V_BMAP, MO:MO + M].set(params["b_map"][0].astype(f32))
    wvec = wvec.at[_V_BAFTER, PO:PO + M].set(params["b_after"][0].astype(f32))
    wvec = wvec.at[_V_BNUM, NO:NO + O].set(params["b_num"][0].astype(f32))
    return wmx.astype(op_dtype), wvec


# ---------------------------------------------------------------------------
# Kernel
# ---------------------------------------------------------------------------
def _make_kernel(cfg, roff, with_hidden, op_dtype):
    xs, ps = cfg["xs"], cfg["ps"]
    H, S = cfg["H"], cfg["S"]
    SO, HO, L = cfg["SO"], cfg["HO"], cfg["L"]
    f32 = jnp.float32

    def body(xy_ref, pix_ref, wmx_ref, wvec_ref, h0_ref, out_ref):
        # --- fused xy / pix embedding (two small MXU passes, lanes 0:2E) ----
        emb = _lrelu(
            jnp.dot(xy_ref[...], wmx_ref[roff["xy"]:roff["xy"] + xs, :],
                    preferred_element_type=f32)
            + jnp.dot(pix_ref[...], wmx_ref[roff["pix"]:roff["pix"] + ps, :],
                      preferred_element_type=f32)
            + wvec_ref[_V_BEMB:_V_BEMB + 1, :])            # [TB, L]
        x0, x1 = emb[:, 0:1], emb[:, 1:2]                  # xy embedding
        p0, p1 = emb[:, 2:3], emb[:, 3:4]                  # pix embedding

        # --- gate + (joint | shape) as K=2 VPU broadcast-FMAs ---------------
        gate = (p0 * wvec_ref[_V_GATE:_V_GATE + 1, 0:1]
                + p1 * wvec_ref[_V_GATE:_V_GATE + 1, 1:2])  # [TB, 1]
        g0, g1 = gate * x0, gate * x1                       # gated xy
        t1 = (g0 * wvec_ref[_V_J0:_V_J0 + 1, :]
              + g1 * wvec_ref[_V_J1:_V_J1 + 1, :]
              + p0 * wvec_ref[_V_J2:_V_J2 + 1, :]
              + p1 * wvec_ref[_V_J3:_V_J3 + 1, :]
              + wvec_ref[_V_BJS:_V_BJS + 1, :])
        # joint pre-act sits at lanes HO:HO+H, shape at SO:SO+S, 0 elsewhere.
        lane = jax.lax.broadcasted_iota(jnp.int32, t1.shape, 1)
        is_joint = (lane >= HO) & (lane < HO + H)
        t1 = jnp.where(is_joint & (t1 < 0), 0.1 * t1, t1)   # LeakyReLU(joint only)

        # --- RNNCell (relu); b_ih + b_hh pre-folded into one bias row -------
        pre = (jnp.dot(t1.astype(op_dtype), wmx_ref[roff["ih"]:roff["ih"] + L, :],
                       preferred_element_type=f32)
               + wvec_ref[_V_BRNN:_V_BRNN + 1, :])
        if with_hidden:
            pre = pre + jnp.dot(h0_ref[...],
                                wmx_ref[roff["hh"]:roff["hh"] + H, :],
                                preferred_element_type=f32)
        h_full = jnp.maximum(pre, 0.0)                      # h at lanes HO:HO+H

        # --- map / after_map / num readouts (all full lane width) -----------
        map_full = (jnp.dot(h_full.astype(op_dtype),
                            wmx_ref[roff["map"]:roff["map"] + L, :],
                            preferred_element_type=f32)
                    + wvec_ref[_V_BMAP:_V_BMAP + 1, :])     # map_ at MO lanes
        # sigmoid(0)=0.5 on the other lanes is harmless: those K rows of
        # w_after are zero.
        sig = jax.nn.sigmoid(map_full)
        pen_full = _lrelu(
            jnp.dot(sig.astype(op_dtype),
                    wmx_ref[roff["after"]:roff["after"] + L, :],
                    preferred_element_type=f32)
            + wvec_ref[_V_BAFTER:_V_BAFTER + 1, :])         # penult at PO lanes
        num_full = (jnp.dot(pen_full.astype(op_dtype),
                            wmx_ref[roff["num"]:roff["num"] + L, :],
                            preferred_element_type=f32)
                    + wvec_ref[_V_BNUM:_V_BNUM + 1, :])     # num at NO lanes

        shape_part = jnp.where((lane >= SO) & (lane < SO + S), t1, 0.0)
        # disjoint-lane full-width adds -> one unmasked [TB, L] store
        out_ref[...] = (num_full + shape_part + map_full + h_full
                        + pen_full).astype(out_ref.dtype)

    if with_hidden:
        def kernel(xy_ref, pix_ref, wmx_ref, wvec_ref, h0_ref, out_ref):
            body(xy_ref, pix_ref, wmx_ref, wvec_ref, h0_ref, out_ref)
    else:
        def kernel(xy_ref, pix_ref, wmx_ref, wvec_ref, out_ref):
            body(xy_ref, pix_ref, wmx_ref, wvec_ref, None, out_ref)
    return kernel


# ---------------------------------------------------------------------------
# Wrapper
# ---------------------------------------------------------------------------
def _choose_batch_tile(B):
    if B >= 1024:
        target = 1024 if B >= 8192 else 512
        n = pl.cdiv(B, target)
        return _round_up(pl.cdiv(B, n), 8)          # balanced 512/1024-row tiles
    if B >= 256:
        return _round_up(pl.cdiv(B, 2), 8)          # >=2 grid steps -> v7x megacore
    return _round_up(max(B, 8), 8)


def gated_mapper_forward(xy, pix, params, hidden=None, batch_tile=None,
                         use_bf16_matmul=False):
    cfg = _make_cfg(params)
    with_hidden = hidden is not None
    roff, _ = _wmx_rows(cfg, with_hidden)
    op_dtype = jnp.bfloat16 if use_bf16_matmul else jnp.float32
    f32 = jnp.float32

    # Packing is cheap XLA work; hoist / jit the whole call when invoking
    # repeatedly (e.g. inside a scan over timesteps).
    wmx, wvec = pack_params(params, cfg, with_hidden, op_dtype)

    B = xy.shape[0]
    if batch_tile is None:
        batch_tile = _choose_batch_tile(B)
    batch_tile = max(8, _round_up(int(batch_tile), 8))
    n_tiles = pl.cdiv(B, batch_tile)
    Bp = n_tiles * batch_tile

    def _prep(a, dtype):
        a = a.astype(dtype)
        if Bp != B:
            a = jnp.pad(a, ((0, Bp - B), (0, 0)))
        return a

    inputs = [_prep(xy, op_dtype), _prep(pix, op_dtype), wmx, wvec]
    in_specs = [
        pl.BlockSpec((batch_tile, cfg["xs"]), lambda i: (i, 0)),
        pl.BlockSpec((batch_tile, cfg["ps"]), lambda i: (i, 0)),
        # weight blocks return block 0 every step -> resident in VMEM
        pl.BlockSpec(wmx.shape, lambda i: (0, 0)),
        pl.BlockSpec(wvec.shape, lambda i: (0, 0)),
    ]
    if with_hidden:
        inputs.append(_prep(hidden, op_dtype))
        in_specs.append(pl.BlockSpec((batch_tile, cfg["H"]), lambda i: (i, 0)))

    L = cfg["L"]
    # VMEM budget derived from the chosen tile (double-buffered activations +
    # weights + in-kernel temporaries), clamped to [16, 48] MiB.
    in_bytes = 2 if use_bf16_matmul else 4
    act = batch_tile * ((cfg["xs"] + cfg["ps"]
                         + (cfg["H"] if with_hidden else 0)) * in_bytes + L * 4)
    wbytes = wmx.size * in_bytes + wvec.size * 4
    scratch = 12 * batch_tile * L * 4
    vmem_limit = int(min(48 << 20, max(16 << 20, 4 * act + 2 * wbytes + scratch)))

    slab = pl.pallas_call(
        _make_kernel(cfg, roff, with_hidden, op_dtype),
        out_shape=jax.ShapeDtypeStruct((Bp, L), f32),
        grid=(n_tiles,),
        in_specs=in_specs,
        out_specs=pl.BlockSpec((batch_tile, L), lambda i: (i, 0)),
        compiler_params=pltpu.CompilerParams(
            dimension_semantics=("parallel",),       # megacore sharding on v7x
            vmem_limit_bytes=vmem_limit),
    )(*inputs)

    if Bp != B:
        slab = slab[:B]
    # Lane layout is co-designed with these slices (contiguous, in order);
    # keep the caller under jit so they fuse with consumers.
    O, S, M, H = cfg["O"], cfg["S"], cfg["M"], cfg["H"]
    NO, SO, MO, HO, PO = cfg["NO"], cfg["SO"], cfg["MO"], cfg["HO"], cfg["PO"]
    num = slab[:, NO:NO + O]
    shape = slab[:, SO:SO + S]
    map_ = slab[:, MO:MO + M]
    h = slab[:, HO:HO + H]
    penult = slab[:, PO:PO + M]
    x = h                                # dropout(p=0) is the identity -> alias
    return num, shape, map_, h, x, penult


# ---------------------------------------------------------------------------
# Init + pure-JAX reference (mirrors the PyTorch forward, train_on='both')
# ---------------------------------------------------------------------------
def init_params(key, xy_size, pix_size, hidden_size, map_size, output_size,
                n_shapes, emb=2):
    """Deterministic init mimicking nn.Linear / nn.RNNCell uniform init."""
    def linear(k, fan_in, fan_out, bias=True):
        kw, kb = jax.random.split(k)
        bound = 1.0 / (fan_in ** 0.5)
        w = jax.random.uniform(kw, (fan_in, fan_out), jnp.float32, -bound, bound)
        if not bias:
            return w
        b = jax.random.uniform(kb, (1, fan_out), jnp.float32, -bound, bound)
        return w, b

    keys = jax.random.split(key, 10)
    p = {}
    p["w_pix"], p["b_pix"] = linear(keys[0], pix_size, emb)
    p["w_gate"] = linear(keys[1], emb, 1, bias=False)
    p["w_shape"], p["b_shape"] = linear(keys[2], emb, n_shapes)
    p["w_xy"], p["b_xy"] = linear(keys[3], xy_size, emb)
    w_joint, p["b_joint"] = linear(keys[4], 2 * emb, hidden_size)
    p["w_joint_xy"], p["w_joint_pix"] = w_joint[:emb], w_joint[emb:]
    bound = 1.0 / (hidden_size ** 0.5)
    k_ih, k_hh, k_bih, k_bhh = jax.random.split(keys[5], 4)
    p["w_ih"] = jax.random.uniform(k_ih, (hidden_size, hidden_size), jnp.float32, -bound, bound)
    p["w_hh"] = jax.random.uniform(k_hh, (hidden_size, hidden_size), jnp.float32, -bound, bound)
    p["b_ih"] = jax.random.uniform(k_bih, (1, hidden_size), jnp.float32, -bound, bound)
    p["b_hh"] = jax.random.uniform(k_bhh, (1, hidden_size), jnp.float32, -bound, bound)
    p["w_map"], p["b_map"] = linear(keys[6], hidden_size, map_size)
    p["w_after"], p["b_after"] = linear(keys[7], map_size, map_size)
    p["w_num"], p["b_num"] = linear(keys[8], map_size, output_size)
    return p


def reference_forward(xy, pix, p, hidden=None):
    hp = jax.lax.Precision.HIGHEST
    mm = lambda a, b: jnp.dot(a, b, precision=hp)
    xy_e = _lrelu(mm(xy, p["w_xy"]) + p["b_xy"])
    pix_e = _lrelu(mm(pix, p["w_pix"]) + p["b_pix"])
    gate = mm(pix_e, p["w_gate"])
    shape = mm(pix_e, p["w_shape"]) + p["b_shape"]
    xy_g = gate * xy_e
    x = _lrelu(mm(xy_g, p["w_joint_xy"]) + mm(pix_e, p["w_joint_pix"]) + p["b_joint"])
    h0 = (jnp.zeros((xy.shape[0], p["w_ih"].shape[0]), jnp.float32)
          if hidden is None else hidden)
    h = jnp.maximum(mm(x, p["w_ih"]) + p["b_ih"] + mm(h0, p["w_hh"]) + p["b_hh"], 0.0)
    x_out = h
    map_ = mm(x_out, p["w_map"]) + p["b_map"]
    sig = jax.nn.sigmoid(map_)
    penult = _lrelu(mm(sig, p["w_after"]) + p["b_after"])
    num = mm(penult, p["w_num"]) + p["b_num"]
    return num, shape, map_, h, x_out, penult


if __name__ == "__main__":
    B = 2
    xy_size, pix_size = 16, 16
    hidden_size, map_size, output_size, n_shapes = 32, 16, 8, 20

    key = jax.random.PRNGKey(0)
    k_xy, k_pix, k_h, k_params = jax.random.split(key, 4)
    xy = jax.random.normal(k_xy, (B, xy_size), jnp.float32)
    pix = jax.random.normal(k_pix, (B, pix_size), jnp.float32)
    h_prev = jax.random.normal(k_h, (B, hidden_size), jnp.float32)
    params = init_params(k_params, xy_size, pix_size, hidden_size, map_size,
                         output_size, n_shapes)

    # Both sides are f32, but the TPU MXU may run f32 matmuls with bf16-split
    # operand passes depending on precision mode; 5e-3 still catches any
    # packing / lane-offset bug by orders of magnitude.
    TOL = dict(atol=5e-3, rtol=5e-3)

    # hidden=None path (specialized: no h0 input, no w_hh matmul), under jit
    # so the slab slices fuse with consumers.
    fwd0 = jax.jit(lambda a, b: gated_mapper_forward(a, b, params))
    outs = jax.block_until_ready(fwd0(xy, pix))
    refs = reference_forward(xy, pix, params)
    for o, r in zip(outs, refs):
        assert o.shape == r.shape and o.dtype == r.dtype
        assert jnp.allclose(o, r, **TOL)

    # recurrent path with an explicit previous hidden state
    fwd1 = jax.jit(lambda a, b, h: gated_mapper_forward(a, b, params, h))
    outs_h = jax.block_until_ready(fwd1(xy, pix, h_prev))
    refs_h = reference_forward(xy, pix, params, h_prev)
    for o, r in zip(outs_h, refs_h):
        assert o.shape == r.shape and o.dtype == r.dtype
        assert jnp.allclose(o, r, **TOL)

    # bf16-operand / f32-accumulate mode (v5e/v6e bandwidth + bf16-native MXU);
    # looser tolerance because operands are truncated to bf16.
    outs_bf = jax.block_until_ready(
        gated_mapper_forward(xy, pix, params, h_prev, use_bf16_matmul=True))
    for o, r in zip(outs_bf, refs_h):
        assert o.shape == r.shape
        assert jnp.allclose(o.astype(jnp.float32), r, atol=1e-1, rtol=1e-1)

    print("KERNEL_OK")
</pallas_src>

<mosaic_0001>
module attributes {stable_mosaic.version = 11 : i64} {
  func.func @kernel(%arg0: i32, %arg1: memref<8x16xf32, #tpu.memory_space<vmem>>, %arg2: memref<8x16xf32, #tpu.memory_space<vmem>>, %arg3: memref<544x128xf32, #tpu.memory_space<vmem>>, %arg4: memref<16x128xf32, #tpu.memory_space<vmem>>, %arg5: memref<8x128xf32, #tpu.memory_space<vmem>>) attributes {dimension_semantics = [#tpu.dimension_semantics<parallel>], iteration_bounds = array<i64: 1>, scalar_prefetch = 0 : i64, scratch_operands = 0 : i64, tpu.core_type = #tpu.core_type<tc>, window_params = [{transform_indices = @transform_0, window_bounds = array<i64: 8, 16>}, {transform_indices = @transform_1, window_bounds = array<i64: 8, 16>}, {pipeline_mode = #tpu.pipeline_mode<synchronous>, transform_indices = @transform_2, window_bounds = array<i64: 544, 128>}, {pipeline_mode = #tpu.pipeline_mode<synchronous>, transform_indices = @transform_3, window_bounds = array<i64: 16, 128>}, {transform_indices = @transform_4, window_bounds = array<i64: 8, 128>}]} {
    %c0 = arith.constant 0 : index
    %c0_0 = arith.constant 0 : index
    %0 = vector.load %arg1[%c0, %c0_0] : memref<8x16xf32, #tpu.memory_space<vmem>>, vector<8x16xf32>
    %c0_1 = arith.constant 0 : index
    %c0_2 = arith.constant 0 : index
    %1 = vector.load %arg3[%c0_1, %c0_2] : memref<544x128xf32, #tpu.memory_space<vmem>>, vector<16x128xf32>
    %cst = arith.constant dense<0.000000e+00> : vector<8x128xf32>
    %2 = tpu.matmul %0, %1, %cst {dimension_numbers = #tpu.dot_dimension_numbers<[1], [0], [0], [1], [0, 0, 1, 1], [], []>} : vector<8x16xf32>, vector<16x128xf32>, vector<8x128xf32> -> vector<8x128xf32>
    %c0_3 = arith.constant 0 : index
    %c0_4 = arith.constant 0 : index
    %3 = vector.load %arg2[%c0_3, %c0_4] : memref<8x16xf32, #tpu.memory_space<vmem>>, vector<8x16xf32>
    %c16 = arith.constant 16 : index
    %c0_5 = arith.constant 0 : index
    %4 = vector.load %arg3[%c16, %c0_5] : memref<544x128xf32, #tpu.memory_space<vmem>>, vector<16x128xf32>
    %cst_6 = arith.constant dense<0.000000e+00> : vector<8x128xf32>
    %5 = tpu.matmul %3, %4, %cst_6 {dimension_numbers = #tpu.dot_dimension_numbers<[1], [0], [0], [1], [0, 0, 1, 1], [], []>} : vector<8x16xf32>, vector<16x128xf32>, vector<8x128xf32> -> vector<8x128xf32>
    %6 = arith.addf %2, %5 : vector<8x128xf32>
    %c0_7 = arith.constant 0 : index
    %c0_8 = arith.constant 0 : index
    %7 = vector.load %arg4[%c0_7, %c0_8] : memref<16x128xf32, #tpu.memory_space<vmem>>, vector<1x128xf32>
    %8 = vector.broadcast %7 : vector<1x128xf32> to vector<8x128xf32>
    %9 = arith.addf %6, %8 : vector<8x128xf32>
    %cst_9 = arith.constant 0.000000e+00 : f32
    %10 = vector.broadcast %cst_9 : f32 to vector<8x128xf32>
    %11 = arith.cmpf ogt, %9, %10 : vector<8x128xf32>
    %cst_10 = arith.constant 1.000000e-01 : f32
    %12 = vector.broadcast %cst_10 : f32 to vector<8x128xf32>
    %13 = arith.mulf %12, %9 : vector<8x128xf32>
    %14 = arith.select %11, %9, %13 : vector<8x128xi1>, vector<8x128xf32>
    %15 = vector.extract_strided_slice %14 {offsets = [0, 0], sizes = [8, 1], strides = [1, 1]} : vector<8x128xf32> to vector<8x1xf32>
    %16 = vector.extract_strided_slice %14 {offsets = [0, 1], sizes = [8, 1], strides = [1, 1]} : vector<8x128xf32> to vector<8x1xf32>
    %17 = vector.extract_strided_slice %14 {offsets = [0, 2], sizes = [8, 1], strides = [1, 1]} : vector<8x128xf32> to vector<8x1xf32>
    %18 = vector.extract_strided_slice %14 {offsets = [0, 3], sizes = [8, 1], strides = [1, 1]} : vector<8x128xf32> to vector<8x1xf32>
    %c1 = arith.constant 1 : index
    %c0_11 = arith.constant 0 : index
    %19 = vector.load %arg4[%c1, %c0_11] : memref<16x128xf32, #tpu.memory_space<vmem>>, vector<1x1xf32>
    %20 = vector.broadcast %19 : vector<1x1xf32> to vector<8x1xf32>
    %21 = arith.mulf %17, %20 : vector<8x1xf32>
    %c1_12 = arith.constant 1 : index
    %c1_13 = arith.constant 1 : index
    %22 = vector.load %arg4[%c1_12, %c1_13] : memref<16x128xf32, #tpu.memory_space<vmem>>, vector<1x1xf32>
    %23 = vector.broadcast %22 : vector<1x1xf32> to vector<8x1xf32>
    %24 = arith.mulf %18, %23 : vector<8x1xf32>
    %25 = arith.addf %21, %24 : vector<8x1xf32>
    %26 = arith.mulf %25, %15 : vector<8x1xf32>
    %27 = arith.mulf %25, %16 : vector<8x1xf32>
    %c2 = arith.constant 2 : index
    %c0_14 = arith.constant 0 : index
    %28 = vector.load %arg4[%c2, %c0_14] : memref<16x128xf32, #tpu.memory_space<vmem>>, vector<1x128xf32>
    %29 = vector.broadcast %26 : vector<8x1xf32> to vector<8x128xf32>
    %30 = vector.broadcast %28 : vector<1x128xf32> to vector<8x128xf32>
    %31 = arith.mulf %29, %30 : vector<8x128xf32>
    %c3 = arith.constant 3 : index
    %c0_15 = arith.constant 0 : index
    %32 = vector.load %arg4[%c3, %c0_15] : memref<16x128xf32, #tpu.memory_space<vmem>>, vector<1x128xf32>
    %33 = vector.broadcast %27 : vector<8x1xf32> to vector<8x128xf32>
    %34 = vector.broadcast %32 : vector<1x128xf32> to vector<8x128xf32>
    %35 = arith.mulf %33, %34 : vector<8x128xf32>
    %36 = arith.addf %31, %35 : vector<8x128xf32>
    %c4 = arith.constant 4 : index
    %c0_16 = arith.constant 0 : index
    %37 = vector.load %arg4[%c4, %c0_16] : memref<16x128xf32, #tpu.memory_space<vmem>>, vector<1x128xf32>
    %38 = vector.broadcast %17 : vector<8x1xf32> to vector<8x128xf32>
    %39 = vector.broadcast %37 : vector<1x128xf32> to vector<8x128xf32>
    %40 = arith.mulf %38, %39 : vector<8x128xf32>
    %41 = arith.addf %36, %40 : vector<8x128xf32>
    %c5 = arith.constant 5 : index
    %c0_17 = arith.constant 0 : index
    %42 = vector.load %arg4[%c5, %c0_17] : memref<16x128xf32, #tpu.memory_space<vmem>>, vector<1x128xf32>
    %43 = vector.broadcast %18 : vector<8x1xf32> to vector<8x128xf32>
    %44 = vector.broadcast %42 : vector<1x128xf32> to vector<8x128xf32>
    %45 = arith.mulf %43, %44 : vector<8x128xf32>
    %46 = arith.addf %41, %45 : vector<8x128xf32>
    %c6 = arith.constant 6 : index
    %c0_18 = arith.constant 0 : index
    %47 = vector.load %arg4[%c6, %c0_18] : memref<16x128xf32, #tpu.memory_space<vmem>>, vector<1x128xf32>
    %48 = vector.broadcast %47 : vector<1x128xf32> to vector<8x128xf32>
    %49 = arith.addf %46, %48 : vector<8x128xf32>
    %50 = tpu.iota {dimensions = array<i32: 1>} : vector<8x128xi32>
    %c44_i32 = arith.constant 44 : i32
    %51 = vector.broadcast %c44_i32 : i32 to vector<8x128xi32>
    %52 = arith.cmpi sge, %50, %51 : vector<8x128xi32>
    %c76_i32 = arith.constant 76 : i32
    %53 = vector.broadcast %c76_i32 : i32 to vector<8x128xi32>
    %54 = arith.cmpi slt, %50, %53 : vector<8x128xi32>
    %55 = arith.andi %52, %54 : vector<8x128xi1>
    %cst_19 = arith.constant 0.000000e+00 : f32
    %56 = vector.broadcast %cst_19 : f32 to vector<8x128xf32>
    %57 = arith.cmpf olt, %49, %56 : vector<8x128xf32>
    %58 = arith.andi %55, %57 : vector<8x128xi1>
    %cst_20 = arith.constant 1.000000e-01 : f32
    %59 = vector.broadcast %cst_20 : f32 to vector<8x128xf32>
    %60 = arith.mulf %59, %49 : vector<8x128xf32>
    %61 = arith.select %58, %60, %49 : vector<8x128xi1>, vector<8x128xf32>
    %c32 = arith.constant 32 : index
    %c0_21 = arith.constant 0 : index
    %62 = vector.load %arg3[%c32, %c0_21] : memref<544x128xf32, #tpu.memory_space<vmem>>, vector<128x128xf32>
    %cst_22 = arith.constant dense<0.000000e+00> : vector<8x128xf32>
    %63 = tpu.matmul %61, %62, %cst_22 {dimension_numbers = #tpu.dot_dimension_numbers<[1], [0], [0], [1], [0, 0, 1, 1], [], []>} : vector<8x128xf32>, vector<128x128xf32>, vector<8x128xf32> -> vector<8x128xf32>
    %c7 = arith.constant 7 : index
    %c0_23 = arith.constant 0 : index
    %64 = vector.load %arg4[%c7, %c0_23] : memref<16x128xf32, #tpu.memory_space<vmem>>, vector<1x128xf32>
    %65 = vector.broadcast %64 : vector<1x128xf32> to vector<8x128xf32>
    %66 = arith.addf %63, %65 : vector<8x128xf32>
    %cst_24 = arith.constant 0.000000e+00 : f32
    %67 = vector.broadcast %cst_24 : f32 to vector<8x128xf32>
    %68 = arith.maximumf %66, %67 : vector<8x128xf32>
    %c160 = arith.constant 160 : index
    %c0_25 = arith.constant 0 : index
    %69 = vector.load %arg3[%c160, %c0_25] : memref<544x128xf32, #tpu.memory_space<vmem>>, vector<128x128xf32>
    %cst_26 = arith.constant dense<0.000000e+00> : vector<8x128xf32>
    %70 = tpu.matmul %68, %69, %cst_26 {dimension_numbers = #tpu.dot_dimension_numbers<[1], [0], [0], [1], [0, 0, 1, 1], [], []>} : vector<8x128xf32>, vector<128x128xf32>, vector<8x128xf32> -> vector<8x128xf32>
    %c8 = arith.constant 8 : index
    %c0_27 = arith.constant 0 : index
    %71 = vector.load %arg4[%c8, %c0_27] : memref<16x128xf32, #tpu.memory_space<vmem>>, vector<1x128xf32>
    %72 = vector.broadcast %71 : vector<1x128xf32> to vector<8x128xf32>
    %73 = arith.addf %70, %72 : vector<8x128xf32>
    %74 = arith.negf %73 : vector<8x128xf32>
    %75 = math.exp %74 : vector<8x128xf32>
    %cst_28 = arith.constant 1.000000e+00 : f32
    %76 = vector.broadcast %cst_28 : f32 to vector<8x128xf32>
    %77 = arith.addf %76, %75 : vector<8x128xf32>
    %78 = arith.divf %76, %77 : vector<8x128xf32>
    %c288 = arith.constant 288 : index
    %c0_29 = arith.constant 0 : index
    %79 = vector.load %arg3[%c288, %c0_29] : memref<544x128xf32, #tpu.memory_space<vmem>>, vector<128x128xf32>
    %cst_30 = arith.constant dense<0.000000e+00> : vector<8x128xf32>
    %80 = tpu.matmul %78, %79, %cst_30 {dimension_numbers = #tpu.dot_dimension_numbers<[1], [0], [0], [1], [0, 0, 1, 1], [], []>} : vector<8x128xf32>, vector<128x128xf32>, vector<8x128xf32> -> vector<8x128xf32>
    %c9 = arith.constant 9 : index
    %c0_31 = arith.constant 0 : index
    %81 = vector.load %arg4[%c9, %c0_31] : memref<16x128xf32, #tpu.memory_space<vmem>>, vector<1x128xf32>
    %82 = vector.broadcast %81 : vector<1x128xf32> to vector<8x128xf32>
    %83 = arith.addf %80, %82 : vector<8x128xf32>
    %cst_32 = arith.constant 0.000000e+00 : f32
    %84 = vector.broadcast %cst_32 : f32 to vector<8x128xf32>
    %85 = arith.cmpf ogt, %83, %84 : vector<8x128xf32>
    %cst_33 = arith.constant 1.000000e-01 : f32
    %86 = vector.broadcast %cst_33 : f32 to vector<8x128xf32>
    %87 = arith.mulf %86, %83 : vector<8x128xf32>
    %88 = arith.select %85, %83, %87 : vector<8x128xi1>, vector<8x128xf32>
    %c416 = arith.constant 416 : index
    %c0_34 = arith.constant 0 : index
    %89 = vector.load %arg3[%c416, %c0_34] : memref<544x128xf32, #tpu.memory_space<vmem>>, vector<128x128xf32>
    %cst_35 = arith.constant dense<0.000000e+00> : vector<8x128xf32>
    %90 = tpu.matmul %88, %89, %cst_35 {dimension_numbers = #tpu.dot_dimension_numbers<[1], [0], [0], [1], [0, 0, 1, 1], [], []>} : vector<8x128xf32>, vector<128x128xf32>, vector<8x128xf32> -> vector<8x128xf32>
    %c10 = arith.constant 10 : index
    %c0_36 = arith.constant 0 : index
    %91 = vector.load %arg4[%c10, %c0_36] : memref<16x128xf32, #tpu.memory_space<vmem>>, vector<1x128xf32>
    %92 = vector.broadcast %91 : vector<1x128xf32> to vector<8x128xf32>
    %93 = arith.addf %90, %92 : vector<8x128xf32>
    %c8_i32 = arith.constant 8 : i32
    %94 = vector.broadcast %c8_i32 : i32 to vector<8x128xi32>
    %95 = arith.cmpi sge, %50, %94 : vector<8x128xi32>
    %c28_i32 = arith.constant 28 : i32
    %96 = vector.broadcast %c28_i32 : i32 to vector<8x128xi32>
    %97 = arith.cmpi slt, %50, %96 : vector<8x128xi32>
    %98 = arith.andi %95, %97 : vector<8x128xi1>
    %cst_37 = arith.constant 0.000000e+00 : f32
    %99 = vector.broadcast %cst_37 : f32 to vector<8x128xf32>
    %100 = arith.select %98, %61, %99 : vector<8x128xi1>, vector<8x128xf32>
    %101 = arith.addf %93, %100 : vector<8x128xf32>
    %102 = arith.addf %101, %73 : vector<8x128xf32>
    %103 = arith.addf %102, %68 : vector<8x128xf32>
    %104 = arith.addf %103, %88 : vector<8x128xf32>
    %c0_38 = arith.constant 0 : index
    %c0_39 = arith.constant 0 : index
    %105 = vector.load %arg5[%c0_38, %c0_39] : memref<8x128xf32, #tpu.memory_space<vmem>>, vector<8x128xf32>
    tpu.vector_store %arg5[%c0_38, %c0_39], %104 {strides = array<i32>} : memref<8x128xf32, #tpu.memory_space<vmem>>, vector<8x128xf32>,
    return
  }
  func.func @transform_0(%arg0: i32) -> (i32, i32) {
    %c0_i32 = arith.constant 0 : i32
    %c0_i32_0 = arith.constant 0 : i32
    return %arg0, %c0_i32 : i32, i32
  }
  func.func @transform_1(%arg0: i32) -> (i32, i32) {
    %c0_i32 = arith.constant 0 : i32
    %c0_i32_0 = arith.constant 0 : i32
    return %arg0, %c0_i32 : i32, i32
  }
  func.func @transform_2(%arg0: i32) -> (i32, i32) {
    %c0_i32 = arith.constant 0 : i32
    %c0_i32_0 = arith.constant 0 : i32
    %c0_i32_1 = arith.constant 0 : i32
    return %c0_i32, %c0_i32_0 : i32, i32
  }
  func.func @transform_3(%arg0: i32) -> (i32, i32) {
    %c0_i32 = arith.constant 0 : i32
    %c0_i32_0 = arith.constant 0 : i32
    %c0_i32_1 = arith.constant 0 : i32
    return %c0_i32, %c0_i32_0 : i32, i32
  }
  func.func @transform_4(%arg0: i32) -> (i32, i32) {
    %c0_i32 = arith.constant 0 : i32
    %c0_i32_0 = arith.constant 0 : i32
    return %arg0, %c0_i32 : i32, i32
  }
}

</mosaic_0001>

<llo_original>
// kernel: _lambda_.1
$region0: #{_lambda_.1}
  #allocation0 [shape = 'u32[]', space=smem, size = 0x4, offset = 0x4, fixed_abs, tag = 'smem constant byte address 0x4 - core index']
  #allocation1 [shape = 'u32[72,128]{1,0:T(1,128)}', space=vmem, size = 0x9000, scoped, tag = 'internal scratch']
  %s0 = inlined_call_operand.vmem [shape: f32[8,16], index: 0, kind: input, shape index: {}]
  %s1 = inlined_call_operand.vmem [shape: f32[8,16], index: 1, kind: input, shape index: {}]
  %s2 = inlined_call_operand.hbm [shape: f32[544,128], index: 2, kind: input, shape index: {}]
  %s3 = inlined_call_operand.vmem [shape: f32[16,128], index: 3, kind: input, shape index: {}]
  %s4 = inlined_call_operand.vmem [shape: f32[8,128], index: 4, kind: output, shape index: {}]
  %s5 = sld [smem:[#allocation0]]
  $region30: #{_lambda_.1} parent=0
    _
  %s7 = ssub.s32 1, %s5
  %s8 = scalar_select 0, %s7, %s5
  $region1: #{_lambda_.1} parent=0
    #allocation2 [shape = 'u8[278528]{0}', space=vmem, size = 0x44000, scoped, tag = 'input window, operand 2, single buffered']
    #allocation3 [shape = 's32[1]{0}', space=sflag, size = 0x4, scoped, tag = 'scoped memory for _lambda_.1']
    %9 = vsyncpa [#allocation3], 0
    // Predicated region
    $region2: #{_lambda_.1} parent=1 // pred_check
      _
    $region3: #{_lambda_.1} parent=1 // pred_check_branch
      %11 = sbr.rel (0) target = $region5
    $region4: #{_lambda_.1} parent=1 // pred_region
      _
    $region5: #{_lambda_.1} parent=1 // pred_fallthru
      _
    // Predicated region
    $region6: #{_lambda_.1} parent=1 // pred_check
      _
    $region7: #{_lambda_.1} parent=1 // pred_check_branch
      %13 = sbr.rel (0) target = $region9
    $region8: #{_lambda_.1} parent=1 // pred_region
      _
    $region9: #{_lambda_.1} parent=1 // pred_fallthru
      _
    // Predicated region
    $region10: #{_lambda_.1} parent=1 // pred_check
      _
    $region11: #{_lambda_.1} parent=1 // pred_check_branch
      %15 = sbr.rel (0) target = $region13
    $region12: #{_lambda_.1} parent=1 // pred_region
      %17 = vsyncadd [#allocation3], 0
      %s18 = sshll.u32 %s2, 4
      %s19 = int_to_ptr.hbm [resolvable:$true] %s18
      %s20 = sshll.u32 [#allocation2], 4
      %s21 = int_to_ptr.vmem [resolvable:$true] %s20
      %26 = dma.hbm_to_vmem [thread:$0]  %s19, 8704, %s21, [#allocation3], 128, 128, 8
    $region13: #{_lambda_.1} parent=1 // pred_fallthru
      _
    // Predicated region
    $region14: #{_lambda_.1} parent=1 // pred_check
      _
    $region15: #{_lambda_.1} parent=1 // pred_check_branch
      %28 = sbr.rel (0) target = $region17
    $region16: #{_lambda_.1} parent=1 // pred_region
      _
    $region17: #{_lambda_.1} parent=1 // pred_fallthru
      _
    // Predicated region
    $region18: #{_lambda_.1} parent=1 // pred_check
      _
    $region19: #{_lambda_.1} parent=1 // pred_check_branch
      %30 = sbr.rel (0) target = $region21
    $region20: #{_lambda_.1} parent=1 // pred_region
      %32 = dma.done [#allocation3], 8704
    $region21: #{_lambda_.1} parent=1 // pred_fallthru
      _
    %v33 = vld [vmem:[%s0] sm:$0xff]
    %v34 = vld [vmem:[#allocation2] sm:$0xff]
    %v35 = vld [vmem:[#allocation2 + $0x8] sm:$0xff]
    %v36 = vld [vmem:[%s1] sm:$0xff]
    %v37 = vld [vmem:[#allocation2 + $0x10] sm:$0xff]
    %v38 = vld [vmem:[#allocation2 + $0x18] sm:$0xff]
    %vm39 = vcmask 130048
    %v41 = vsel %vm39, %v36, 0
    %43 = vmatpush.msra.mxu0 0.0
    %44 = vmatpush.msra.mxu0 0.0
    %45 = vmatpush.msra.mxu0 0.0
    %46 = vmatpush.msra.mxu0 0.0
    %47 = vmatpush.msra.mxu0 0.0
    %48 = vmatpush.msra.mxu0 0.0
    %49 = vmatpush.msra.mxu0 0.0
    %50 = vmatpush.msra.mxu0 0.0
    %51 = vmatpush.msra.mxu0 0.0
    %52 = vmatpush.msra.mxu0 0.0
    %53 = vmatpush.msra.mxu0 0.0
    %54 = vmatpush.msra.mxu0 0.0
    %55 = vmatpush.msra.mxu0 0.0
    %56 = vmatpush.msra.mxu0 0.0
    %57 = vmatpush.msra.mxu0 %v38
    %58 = vmatpush.msra.mxu0 %v37
    %59 = vmatmul.f32.gmra.mxu0 %v41
    %v60 = vpop.f32.mrf.mxu0
    %v61 = vadd.f32 0.0, %v60
    %62 = vdwg.mxu0
    %v64 = vsel %vm39, %v33, 0
    %66 = vmatpush.msra.mxu0 0.0
    %67 = vmatpush.msra.mxu0 0.0
    %68 = vmatpush.msra.mxu0 0.0
    %69 = vmatpush.msra.mxu0 0.0
    %70 = vmatpush.msra.mxu0 0.0
    %71 = vmatpush.msra.mxu0 0.0
    %72 = vmatpush.msra.mxu0 0.0
    %73 = vmatpush.msra.mxu0 0.0
    %74 = vmatpush.msra.mxu0 0.0
    %75 = vmatpush.msra.mxu0 0.0
    %76 = vmatpush.msra.mxu0 0.0
    %77 = vmatpush.msra.mxu0 0.0
    %78 = vmatpush.msra.mxu0 0.0
    %79 = vmatpush.msra.mxu0 0.0
    %80 = vmatpush.msra.mxu0 %v35
    %81 = vmatpush.msra.mxu0 %v34
    %82 = vmatmul.f32.gmra.mxu0 %v64
    %v83 = vpop.f32.mrf.mxu0
    %v84 = vadd.f32 %v61, %v83
    %85 = vdwg.mxu0
    %v86 = vld [vmem:[%s3] sm:$0x1]
    %v87 = vperm.slane %v86, 0
    %v88 = vadd.f32 %v84, %v87
    %vm89 = vcmp.gt.f32.partialorder %v88, 0.0
    %v90 = vmul.f32 %v88, 0.1
    %v91 = vsel %vm89, %v88, %v90
    %v92 = vld [vmem:[%s3 + $0x1] sm:$0x1]
    %v93 = vperm.slane %v92, 0
    %95 = vrot.lane.b32.xlu0 %v93, 2
    %v96 = vpop.permute.xlu0 %95
    %v98 = vmul.f32 %v91, %v96
    %100 = vrot.lane.b32.xlu0 %v98, 127
    %v101 = vpop.permute.xlu0 %100
    %v103 = vadd.f32 %v98, %v101
    %105 = vrot.lane.b32.xlu0 %v91, 2
    %v106 = vpop.permute.xlu0 %105
    %v108 = vmul.f32 %v103, %v106
    %109 = vrot.lane.b32.xlu0 %v91, 1
    %v110 = vpop.permute.xlu0 %109
    %v112 = vmul.f32 %v103, %v110
    %v113 = vld [vmem:[%s3 + $0x2] sm:$0x1]
    %115 = vset.pattern.permute.xlu0 2
    %116 = vperm.xlu0 %115, %v108
    %v117 = vpop.permute.xlu0 %116
    %v119 = vperm.slane %v113, 0
    %v120 = vmul.f32 %v117, %v119
    %v121 = vld [vmem:[%s3 + $0x3] sm:$0x1]
    %123 = vset.pattern.permute.xlu0 2
    %124 = vperm.xlu0 %123, %v112
    %v125 = vpop.permute.xlu0 %124
    %v127 = vperm.slane %v121, 0
    %v128 = vmul.f32 %v125, %v127
    %v129 = vadd.f32 %v120, %v128
    %v130 = vld [vmem:[%s3 + $0x4] sm:$0x1]
    %131 = vset.pattern.permute.xlu0 2
    %132 = vperm.xlu0 %131, %v91
    %v133 = vpop.permute.xlu0 %132
    %v135 = vperm.slane %v130, 0
    %v136 = vmul.f32 %v133, %v135
    %v137 = vadd.f32 %v129, %v136
    %v138 = vld [vmem:[%s3 + $0x5] sm:$0x1]
    %139 = vset.pattern.permute.xlu0 3
    %140 = vperm.xlu0 %139, %v91
    %v141 = vpop.permute.xlu0 %140
    %v143 = vperm.slane %v138, 0
    %v144 = vmul.f32 %v141, %v143
    %v145 = vadd.f32 %v137, %v144
    %v146 = vld [vmem:[%s3 + $0x6] sm:$0x1]
    %v147 = vperm.slane %v146, 0
    %v148 = vadd.f32 %v145, %v147
    %v149 = vlaneseq
    %v150 = vand.u32 %v149, 127
    %vm151 = vcmp.ge.s32.totalorder %v150, 44
    %vm152 = vcmp.lt.s32.totalorder %v150, 76
    %vm153 = vmand %vm151, %vm152
    %vm154 = vcmp.lt.f32.partialorder %v148, 0.0
    %vm155 = vmand %vm153, %vm154
    %v156 = vmul.f32 %v148, 0.1
    %v157 = vsel %vm155, %v156, %v148
    %v158 = vld [vmem:[#allocation2 + $0x20] sm:$0xff]
    %v159 = vld [vmem:[#allocation2 + $0x28] sm:$0xff]
    %v160 = vld [vmem:[#allocation2 + $0x30] sm:$0xff]
    %v161 = vld [vmem:[#allocation2 + $0x38] sm:$0xff]
    %v162 = vld [vmem:[#allocation2 + $0x40] sm:$0xff]
    %v163 = vld [vmem:[#allocation2 + $0x48] sm:$0xff]
    %v164 = vld [vmem:[#allocation2 + $0x50] sm:$0xff]
    %v165 = vld [vmem:[#allocation2 + $0x58] sm:$0xff]
    %v166 = vld [vmem:[#allocation2 + $0x60] sm:$0xff]
    %v167 = vld [vmem:[#allocation2 + $0x68] sm:$0xff]
    %v168 = vld [vmem:[#allocation2 + $0x70] sm:$0xff]
    %v169 = vld [vmem:[#allocation2 + $0x78] sm:$0xff]
    %v170 = vld [vmem:[#allocation2 + $0x80] sm:$0xff]
    %v171 = vld [vmem:[#allocation2 + $0x88] sm:$0xff]
    %v172 = vld [vmem:[#allocation2 + $0x90] sm:$0xff]
    %v173 = vld [vmem:[#allocation2 + $0x98] sm:$0xff]
    %v174 = vld [vmem:[%s3 + $0x7] sm:$0x1]
    %v175 = vperm.slane %v174, 0
    %176 = vmatpush.msra.mxu0 %v173
    %177 = vmatpush.msra.mxu0 %v172
    %178 = vmatpush.msra.mxu0 %v171
    %179 = vmatpush.msra.mxu0 %v170
    %180 = vmatpush.msra.mxu0 %v169
    %181 = vmatpush.msra.mxu0 %v168
    %182 = vmatpush.msra.mxu0 %v167
    %183 = vmatpush.msra.mxu0 %v166
    %184 = vmatpush.msra.mxu0 %v165
    %185 = vmatpush.msra.mxu0 %v164
    %186 = vmatpush.msra.mxu0 %v163
    %187 = vmatpush.msra.mxu0 %v162
    %188 = vmatpush.msra.mxu0 %v161
    %189 = vmatpush.msra.mxu0 %v160
    %190 = vmatpush.msra.mxu0 %v159
    %191 = vmatpush.msra.mxu0 %v158
    %192 = vmatmul.f32.gmra.mxu0 %v157
    %v193 = vpop.f32.mrf.mxu0
    %v194 = vadd.f32 %v175, %v193
    %195 = vdwg.mxu0
    %v196 = vmax.f32 %v194, 0.0
    %v197 = vld [vmem:[#allocation2 + $0xa0] sm:$0xff]
    %v198 = vld [vmem:[#allocation2 + $0xa8] sm:$0xff]
    %v199 = vld [vmem:[#allocation2 + $0xb0] sm:$0xff]
    %v200 = vld [vmem:[#allocation2 + $0xb8] sm:$0xff]
    %v201 = vld [vmem:[#allocation2 + $0xc0] sm:$0xff]
    %v202 = vld [vmem:[#allocation2 + $0xc8] sm:$0xff]
    %v203 = vld [vmem:[#allocation2 + $0xd0] sm:$0xff]
    %v204 = vld [vmem:[#allocation2 + $0xd8] sm:$0xff]
    %v205 = vld [vmem:[#allocation2 + $0xe0] sm:$0xff]
    %v206 = vld [vmem:[#allocation2 + $0xe8] sm:$0xff]
    %v207 = vld [vmem:[#allocation2 + $0xf0] sm:$0xff]
    %v208 = vld [vmem:[#allocation2 + $0xf8] sm:$0xff]
    %v209 = vld [vmem:[#allocation2 + $0x100] sm:$0xff]
    %v210 = vld [vmem:[#allocation2 + $0x108] sm:$0xff]
    %v211 = vld [vmem:[#allocation2 + $0x110] sm:$0xff]
    %v212 = vld [vmem:[#allocation2 + $0x118] sm:$0xff]
    %v213 = vld [vmem:[%s3 + $0x8] sm:$0x1]
    %v214 = vperm.slane %v213, 0
    %215 = vmatpush.msra.mxu0 %v212
    %216 = vmatpush.msra.mxu0 %v211
    %217 = vmatpush.msra.mxu0 %v210
    %218 = vmatpush.msra.mxu0 %v209
    %219 = vmatpush.msra.mxu0 %v208
    %220 = vmatpush.msra.mxu0 %v207
    %221 = vmatpush.msra.mxu0 %v206
    %222 = vmatpush.msra.mxu0 %v205
    %223 = vmatpush.msra.mxu0 %v204
    %224 = vmatpush.msra.mxu0 %v203
    %225 = vmatpush.msra.mxu0 %v202
    %226 = vmatpush.msra.mxu0 %v201
    %227 = vmatpush.msra.mxu0 %v200
    %228 = vmatpush.msra.mxu0 %v199
    %229 = vmatpush.msra.mxu0 %v198
    %230 = vmatpush.msra.mxu0 %v197
    %231 = vmatmul.f32.gmra.mxu0 %v196
    %v232 = vpop.f32.mrf.mxu0
    %v233 = vadd.f32 %v214, %v232
    %234 = vdwg.mxu0
    %v235 = vxor.u32 %v233, 2147483648
    %v236 = vmul.f32 %v235, 1.442695
    %v237 = vpow.pop %v236
    %v238 = vadd.f32 %v237, 1.0
    %v239 = vrcp.pop %v238
    %v240 = vmul.f32 %v238, %v239
    %v241 = vsub.f32 1.0, %v240
    %v242 = vmul.f32 %v239, %v241
    %v243 = vadd.f32 %v239, %v242
    %vm244 = vweird.f32 %v238
    %vm245 = vweird.f32 %v239
    %vm246 = vmor %vm244, %vm245
    %v247 = vsel %vm246, %v239, %v243
    %v248 = vand.u32 2147483647, %v238
    %vm249 = vcmp.eq.f32.partialorder %v248, 8.507059e+37
    %v250 = vand.u32 %v238, 2147483648
    %v251 = vor.u32 1.1754944e-38, %v250
    %v252 = vsel %vm249, %v251, %v247
    %v253 = vmul.f32 1.0, %v252
    %v254 = vld [vmem:[#allocation2 + $0x120] sm:$0xff]
    %v255 = vld [vmem:[#allocation2 + $0x128] sm:$0xff]
    %v256 = vld [vmem:[#allocation2 + $0x130] sm:$0xff]
    %v257 = vld [vmem:[#allocation2 + $0x138] sm:$0xff]
    %v258 = vld [vmem:[#allocation2 + $0x140] sm:$0xff]
    %v259 = vld [vmem:[#allocation2 + $0x148] sm:$0xff]
    %v260 = vld [vmem:[#allocation2 + $0x150] sm:$0xff]
    %v261 = vld [vmem:[#allocation2 + $0x158] sm:$0xff]
    %v262 = vld [vmem:[#allocation2 + $0x160] sm:$0xff]
    %v263 = vld [vmem:[#allocation2 + $0x168] sm:$0xff]
    %v264 = vld [vmem:[#allocation2 + $0x170] sm:$0xff]
    %v265 = vld [vmem:[#allocation2 + $0x178] sm:$0xff]
    %v266 = vld [vmem:[#allocation2 + $0x180] sm:$0xff]
    %v267 = vld [vmem:[#allocation2 + $0x188] sm:$0xff]
    %v268 = vld [vmem:[#allocation2 + $0x190] sm:$0xff]
    %v269 = vld [vmem:[#allocation2 + $0x198] sm:$0xff]
    %v270 = vld [vmem:[%s3 + $0x9] sm:$0x1]
    %v271 = vperm.slane %v270, 0
    %272 = vmatpush.msra.mxu0 %v269
    %273 = vmatpush.msra.mxu0 %v268
    %274 = vmatpush.msra.mxu0 %v267
    %275 = vmatpush.msra.mxu0 %v266
    %276 = vmatpush.msra.mxu0 %v265
    %277 = vmatpush.msra.mxu0 %v264
    %278 = vmatpush.msra.mxu0 %v263
    %279 = vmatpush.msra.mxu0 %v262
    %280 = vmatpush.msra.mxu0 %v261
    %281 = vmatpush.msra.mxu0 %v260
    %282 = vmatpush.msra.mxu0 %v259
    %283 = vmatpush.msra.mxu0 %v258
    %284 = vmatpush.msra.mxu0 %v257
    %285 = vmatpush.msra.mxu0 %v256
    %286 = vmatpush.msra.mxu0 %v255
    %287 = vmatpush.msra.mxu0 %v254
    %288 = vmatmul.f32.gmra.mxu0 %v253
    %v289 = vpop.f32.mrf.mxu0
    %v290 = vadd.f32 %v271, %v289
    %291 = vdwg.mxu0
    %vm292 = vcmp.gt.f32.partialorder %v290, 0.0
    %v293 = vmul.f32 %v290, 0.1
    %v294 = vsel %vm292, %v290, %v293
    %v295 = vld [vmem:[#allocation2 + $0x1a0] sm:$0xff]
    %v296 = vld [vmem:[#allocation2 + $0x1a8] sm:$0xff]
    %v297 = vld [vmem:[#allocation2 + $0x1b0] sm:$0xff]
    %v298 = vld [vmem:[#allocation2 + $0x1b8] sm:$0xff]
    %v299 = vld [vmem:[#allocation2 + $0x1c0] sm:$0xff]
    %v300 = vld [vmem:[#allocation2 + $0x1c8] sm:$0xff]
    %v301 = vld [vmem:[#allocation2 + $0x1d0] sm:$0xff]
    %v302 = vld [vmem:[#allocation2 + $0x1d8] sm:$0xff]
    %v303 = vld [vmem:[#allocation2 + $0x1e0] sm:$0xff]
    %v304 = vld [vmem:[#allocation2 + $0x1e8] sm:$0xff]
    %v305 = vld [vmem:[#allocation2 + $0x1f0] sm:$0xff]
    %v306 = vld [vmem:[#allocation2 + $0x1f8] sm:$0xff]
    %v307 = vld [vmem:[#allocation2 + $0x200] sm:$0xff]
    %v308 = vld [vmem:[#allocation2 + $0x208] sm:$0xff]
    %v309 = vld [vmem:[#allocation2 + $0x210] sm:$0xff]
    %v310 = vld [vmem:[#allocation2 + $0x218] sm:$0xff]
    %v311 = vld [vmem:[%s3 + $0xa] sm:$0x1]
    %v312 = vperm.slane %v311, 0
    %313 = vmatpush.msra.mxu0 %v310
    %314 = vmatpush.msra.mxu0 %v309
    %315 = vmatpush.msra.mxu0 %v308
    %316 = vmatpush.msra.mxu0 %v307
    %317 = vmatpush.msra.mxu0 %v306
    %318 = vmatpush.msra.mxu0 %v305
    %319 = vmatpush.msra.mxu0 %v304
    %320 = vmatpush.msra.mxu0 %v303
    %321 = vmatpush.msra.mxu0 %v302
    %322 = vmatpush.msra.mxu0 %v301
    %323 = vmatpush.msra.mxu0 %v300
    %324 = vmatpush.msra.mxu0 %v299
    %325 = vmatpush.msra.mxu0 %v298
    %326 = vmatpush.msra.mxu0 %v297
    %327 = vmatpush.msra.mxu0 %v296
    %328 = vmatpush.msra.mxu0 %v295
    %329 = vmatmul.f32.gmra.mxu0 %v294
    %v330 = vpop.f32.mrf.mxu0
    %v331 = vadd.f32 %v312, %v330
    %332 = vdwg.mxu0
    %vm333 = vcmp.ge.s32.totalorder %v150, 8
    %vm334 = vcmp.lt.s32.totalorder %v150, 28
    %vm335 = vmand %vm333, %vm334
    %v336 = vsel %vm335, %v157, 0.0
    %v337 = vadd.f32 %v331, %v336
    %v338 = vadd.f32 %v337, %v233
    %v339 = vadd.f32 %v338, %v196
    %v340 = vadd.f32 %v339, %v294
    %341 = vst [vmem:[%s4] sm:$0xff] %v340
    // Predicated region
    $region22: #{_lambda_.1} parent=1 // pred_check
      _
    $region23: #{_lambda_.1} parent=1 // pred_check_branch
      %343 = sbr.rel (0) target = $region25
    $region24: #{_lambda_.1} parent=1 // pred_region
      _
    $region25: #{_lambda_.1} parent=1 // pred_fallthru
      _
    // Predicated region
    $region26: #{_lambda_.1} parent=1 // pred_check
      _
    $region27: #{_lambda_.1} parent=1 // pred_check_branch
      %345 = sbr.rel (0) target = $region29
    $region28: #{_lambda_.1} parent=1 // pred_region
      _
    $region29: #{_lambda_.1} parent=1 // pred_fallthru
      _
    %346 = vsyncpa [#allocation3], 1

</llo_original>
